<compile_context>
chip_gen: v7x
topology: tpu7x:2x2x1
jax: 0.10.0
libtpu: 0.0.40
codegen_flags: <defaults>
</compile_context>

<pallas_src>
import functools

import jax
import jax.numpy as jnp
from jax.experimental import pallas as pl
from jax.experimental.pallas import tpu as pltpu

_LN_EPS = 1e-5


def _round_up(n, m):
    return ((n + m - 1) // m) * m


def _vmem_capacity_bytes():
    """Physical VMEM per TensorCore (trace-time query; conservative fallback)."""
    try:
        info = pltpu.get_tpu_info()
        cap = getattr(info, "vmem_capacity_bytes", None)
        if cap:
            return int(cap)
    except Exception:
        pass
    return 64 * 1024 * 1024  # v7x-sized (smallest current generation)


def _ada_ln_kernel(x_ref, aff_ref, o_ref, *, d_valid):
    """One-pass LayerNorm moments + folded AdaLN affine over a (br, Dp) row tile.

    aff_ref holds [1 + scale; shift] stacked as (2, Dp).  If Dp > d_valid the
    padded columns are zero in both x and aff, so they contribute nothing to
    the sums and their outputs are stripped by the wrapper.
    """
    x = x_ref[...].astype(jnp.float32)
    inv_d = 1.0 / d_valid
    s = jnp.sum(x, axis=-1, keepdims=True)             # (br, 1)
    ss = jnp.sum(x * x, axis=-1, keepdims=True)        # (br, 1) independent reduce
    mean = s * inv_d
    var = jnp.maximum(ss * inv_d - mean * mean, 0.0)   # guard mild cancellation
    rstd = jax.lax.rsqrt(var + _LN_EPS)                 # (br, 1)

    aff = aff_ref[...].astype(jnp.float32)              # (2, Dp)
    scale1 = aff[0:1, :]                                 # (1, Dp) = 1 + scale
    shift = aff[1:2, :]                                  # (1, Dp)

    k1 = rstd * scale1                                   # (br, Dp)
    k2 = shift - mean * k1                               # (br, Dp)
    o_ref[...] = (x * k1 + k2).astype(o_ref.dtype)


@functools.partial(jax.jit, static_argnames=("block_rows", "alias_input"))
def ada_layer_norm(x, timestep, emb_table, w, b, *, block_rows=None,
                   alias_input=False):
    """x: (B, S, D) float; timestep: scalar int; emb_table: (num_embeddings, D);
    w: (D, 2D) (already transposed from torch's (2D, D)); b: (2D,)."""
    B, S, D = x.shape
    N = B * S
    itemsize = jnp.dtype(x.dtype).itemsize

    # ---- Glue (single-row matmul; hoisted out of the grid loop).
    e = jnp.take(emb_table, timestep, axis=0).astype(jnp.float32)      # (D,)
    e = e * jax.nn.sigmoid(e)                                          # SiLU
    proj = e @ w.astype(jnp.float32) + b.astype(jnp.float32)           # (2D,)
    scale1 = 1.0 + proj[:D]
    shift = proj[D:]

    # ---- Lane-dense last dim: pad D to a multiple of 128 only if needed.
    # (Typical diffusion dims 768/1024/1152/1280 never take this branch.)
    Dp = _round_up(D, 128)
    x2 = x.reshape(N, D)
    if Dp != D:
        x2 = jnp.pad(x2, ((0, 0), (0, Dp - D)))
        scale1 = jnp.pad(scale1, (0, Dp - D))
        shift = jnp.pad(shift, (0, Dp - D))
    aff = jnp.stack([scale1, shift], axis=0).astype(jnp.float32)       # (2, Dp)

    # ---- Generation-aware VMEM budget (v7x: 64 MiB physical; v5e/v6e: 128 MiB).
    vmem_cap = _vmem_capacity_bytes()
    if vmem_cap >= 128 * 1024 * 1024:
        vmem_limit = 100 * 1024 * 1024
        tile_budget = 72 * 1024 * 1024
    else:
        vmem_limit = 48 * 1024 * 1024
        tile_budget = 40 * 1024 * 1024

    # ---- Row-tile selection.
    # Sublane alignment: 8 rows (32-bit), 16 (bf16), 32 (8-bit dtypes).
    sub = max(8, 32 // itemsize)
    # Full per-element footprint: double-buffered input + output tiles
    # (2*itemsize each) plus ~3 live f32 intermediates inside the body.
    bytes_per_row = Dp * (4 * itemsize + 12)
    max_br = max(sub, ((tile_budget // bytes_per_row) // sub) * sub)
    if block_rows is None:
        # Byte-target ~2 MiB input tile: amortizes ~0.35 us per-grid-step overhead
        # for small D and stays modest for huge D.
        target_tile_bytes = 2 * 1024 * 1024
        br = _round_up(max(1, target_tile_bytes // (Dp * itemsize)), sub)
    else:
        br = _round_up(block_rows, sub)
    br = min(br, _round_up(N, sub), max_br)
    # Keep >= 2 grid blocks when possible so v7x megacore uses both TensorCores.
    if N > sub:
        br = min(br, _round_up(pl.cdiv(N, 2), sub))
    br = max(br, sub)

    grid = (pl.cdiv(N, br),)   # ragged tail handled by masked writeback

    call_kwargs = {}
    if alias_input:
        # Reuses x2's HBM buffer for the output when the caller donates x.
        call_kwargs["input_output_aliases"] = {0: 0}

    out = pl.pallas_call(
        functools.partial(_ada_ln_kernel, d_valid=float(D)),
        out_shape=jax.ShapeDtypeStruct((N, Dp), x.dtype),
        grid_spec=pltpu.PrefetchScalarGridSpec(
            num_scalar_prefetch=0,
            grid=grid,
            in_specs=[
                pl.BlockSpec((br, Dp), lambda i: (i, 0)),  # x row tile
                pl.BlockSpec((2, Dp), lambda i: (0, 0)),   # [1+scale; shift]
            ],
            out_specs=pl.BlockSpec((br, Dp), lambda i: (i, 0)),
        ),
        compiler_params=pltpu.CompilerParams(
            dimension_semantics=("parallel",),
            vmem_limit_bytes=vmem_limit,
        ),
        **call_kwargs,
    )(x2, aff)

    if Dp != D:
        out = out[:, :D]
    return out.reshape(B, S, D)


def _reference(x, timestep, emb_table, w, b):
    """Pure-JAX reference matching the PyTorch module."""
    e = emb_table[timestep]
    e = e * jax.nn.sigmoid(e)
    proj = e @ w + b
    D = x.shape[-1]
    scale, shift = proj[:D], proj[D:]
    mean = jnp.mean(x, axis=-1, keepdims=True)
    var = jnp.mean((x - mean) ** 2, axis=-1, keepdims=True)
    normed = (x - mean) / jnp.sqrt(var + 1e-5)
    return normed * (1 + scale) + shift


if __name__ == "__main__":
    embedding_dim = 32
    num_embeddings = 10
    batch, seq = 2, 8

    key = jax.random.PRNGKey(0)
    k_x, k_emb, k_w, k_b = jax.random.split(key, 4)

    x = jax.random.normal(k_x, (batch, seq, embedding_dim), dtype=jnp.float32)
    timestep = jnp.int32(3)

    # Deterministic parameter init (shapes follow the torch module's __init__).
    emb_table = jax.random.normal(k_emb, (num_embeddings, embedding_dim),
                                  dtype=jnp.float32)            # nn.Embedding weight
    bound = 1.0 / (embedding_dim ** 0.5)
    # torch Linear weight is (2D, D); store transposed as (D, 2D) for x @ W.
    w = jax.random.uniform(k_w, (embedding_dim, 2 * embedding_dim),
                           minval=-bound, maxval=bound, dtype=jnp.float32)
    b = jax.random.uniform(k_b, (2 * embedding_dim,),
                           minval=-bound, maxval=bound, dtype=jnp.float32)

    out = ada_layer_norm(x, timestep, emb_table, w, b)
    out = jax.block_until_ready(out)

    ref = _reference(x, timestep, emb_table, w, b)
    assert out.shape == x.shape
    assert jnp.allclose(out, ref, atol=1e-4, rtol=1e-4), "mismatch vs reference"

    print("KERNEL_OK")
</pallas_src>

<mosaic_0001>
module attributes {stable_mosaic.version = 11 : i64} {
  func.func @_ada_ln_kernel(%arg0: i32, %arg1: memref<8x128xf32, #tpu.memory_space<vmem>>, %arg2: memref<2x128xf32, #tpu.memory_space<vmem>>, %arg3: memref<8x128xf32, #tpu.memory_space<vmem>>) attributes {dimension_semantics = [#tpu.dimension_semantics<parallel>], iteration_bounds = array<i64: 2>, scalar_prefetch = 0 : i64, scratch_operands = 0 : i64, tpu.core_type = #tpu.core_type<tc>, window_params = [{transform_indices = @transform_0, window_bounds = array<i64: 8, 128>}, {pipeline_mode = #tpu.pipeline_mode<synchronous>, transform_indices = @transform_1, window_bounds = array<i64: 2, 128>}, {transform_indices = @transform_2, window_bounds = array<i64: 8, 128>}]} {
    %c0 = arith.constant 0 : index
    %c0_0 = arith.constant 0 : index
    %0 = vector.load %arg1[%c0, %c0_0] : memref<8x128xf32, #tpu.memory_space<vmem>>, vector<8x128xf32>
    %cst = arith.constant dense<0.000000e+00> : vector<8xf32>
    %1 = vector.multi_reduction <add>, %0, %cst [1] : vector<8x128xf32> to vector<8xf32>
    %2 = vector.shape_cast %1 : vector<8xf32> to vector<8x1xf32>
    %3 = arith.mulf %0, %0 : vector<8x128xf32>
    %cst_1 = arith.constant dense<0.000000e+00> : vector<8xf32>
    %4 = vector.multi_reduction <add>, %3, %cst_1 [1] : vector<8x128xf32> to vector<8xf32>
    %5 = vector.shape_cast %4 : vector<8xf32> to vector<8x1xf32>
    %cst_2 = arith.constant 3.125000e-02 : f32
    %6 = vector.broadcast %cst_2 : f32 to vector<8x1xf32>
    %7 = arith.mulf %2, %6 : vector<8x1xf32>
    %cst_3 = arith.constant 3.125000e-02 : f32
    %8 = vector.broadcast %cst_3 : f32 to vector<8x1xf32>
    %9 = arith.mulf %5, %8 : vector<8x1xf32>
    %10 = arith.mulf %7, %7 : vector<8x1xf32>
    %11 = arith.subf %9, %10 : vector<8x1xf32>
    %cst_4 = arith.constant 0.000000e+00 : f32
    %12 = vector.broadcast %cst_4 : f32 to vector<8x1xf32>
    %13 = arith.maximumf %11, %12 : vector<8x1xf32>
    %cst_5 = arith.constant 9.99999974E-6 : f32
    %14 = vector.broadcast %cst_5 : f32 to vector<8x1xf32>
    %15 = arith.addf %13, %14 : vector<8x1xf32>
    %16 = math.rsqrt %15 : vector<8x1xf32>
    %c0_6 = arith.constant 0 : index
    %c0_7 = arith.constant 0 : index
    %17 = vector.load %arg2[%c0_6, %c0_7] : memref<2x128xf32, #tpu.memory_space<vmem>>, vector<2x128xf32>
    %18 = vector.extract_strided_slice %17 {offsets = [0, 0], sizes = [1, 128], strides = [1, 1]} : vector<2x128xf32> to vector<1x128xf32>
    %19 = vector.extract_strided_slice %17 {offsets = [1, 0], sizes = [1, 128], strides = [1, 1]} : vector<2x128xf32> to vector<1x128xf32>
    %20 = vector.broadcast %16 : vector<8x1xf32> to vector<8x128xf32>
    %21 = vector.broadcast %18 : vector<1x128xf32> to vector<8x128xf32>
    %22 = arith.mulf %20, %21 : vector<8x128xf32>
    %23 = vector.broadcast %7 : vector<8x1xf32> to vector<8x128xf32>
    %24 = arith.mulf %23, %22 : vector<8x128xf32>
    %25 = vector.broadcast %19 : vector<1x128xf32> to vector<8x128xf32>
    %26 = arith.subf %25, %24 : vector<8x128xf32>
    %27 = arith.mulf %0, %22 : vector<8x128xf32>
    %28 = arith.addf %27, %26 : vector<8x128xf32>
    %c0_8 = arith.constant 0 : index
    %c0_9 = arith.constant 0 : index
    %29 = vector.load %arg3[%c0_8, %c0_9] : memref<8x128xf32, #tpu.memory_space<vmem>>, vector<8x128xf32>
    tpu.vector_store %arg3[%c0_8, %c0_9], %28 {strides = array<i32>} : memref<8x128xf32, #tpu.memory_space<vmem>>, vector<8x128xf32>,
    return
  }
  func.func @transform_0(%arg0: i32) -> (i32, i32) {
    %c0_i32 = arith.constant 0 : i32
    %c0_i32_0 = arith.constant 0 : i32
    return %arg0, %c0_i32 : i32, i32
  }
  func.func @transform_1(%arg0: i32) -> (i32, i32) {
    %c0_i32 = arith.constant 0 : i32
    %c0_i32_0 = arith.constant 0 : i32
    %c0_i32_1 = arith.constant 0 : i32
    return %c0_i32, %c0_i32_0 : i32, i32
  }
  func.func @transform_2(%arg0: i32) -> (i32, i32) {
    %c0_i32 = arith.constant 0 : i32
    %c0_i32_0 = arith.constant 0 : i32
    return %arg0, %c0_i32 : i32, i32
  }
}

</mosaic_0001>

<llo_original>
// kernel: ada_layer_norm.1
$region0: #{ada_layer_norm.1}
  #allocation0 [shape = 'u32[]', space=smem, size = 0x4, offset = 0x4, fixed_abs, tag = 'smem constant byte address 0x4 - core index']
  #allocation1 [shape = 'u32[144,128]{1,0:T(1,128)}', space=vmem, size = 0x12000, scoped, tag = 'internal scratch']
  %s0 = inlined_call_operand.vmem [shape: f32[16,128], index: 0, kind: input, shape index: {}]
  %s1 = inlined_call_operand.vmem [shape: f32[2,128], index: 1, kind: input, shape index: {}]
  %s2 = inlined_call_operand.vmem [shape: f32[16,128], index: 2, kind: output, shape index: {}]
  %s3 = sld [smem:[#allocation0]]
  $region41: #{ada_layer_norm.1} parent=0
    _
  %s5 = ssub.s32 1, %s3
  %s6 = scalar_select 0, %s5, %s3
  loop: start=0, step=1, limit=4
  $region2: #{ada_layer_norm.1} parent=0 // loop_pre_header
    _
  $region3: #{ada_layer_norm.1} parent=0 // loop_header
    %s8 = sphi 0, %s12
    %p9 = scmp.ge.s32.totalorder %s8, 4
    %s18 = sphi 0, %s20
    %s21 = sphi 0, %s18
    %s22 = sphi 0, %s21
    %s38 = sphi 0, %s22
    %s42 = sphi 0, %s42
    %s44 = sphi 0, %s42
    %s45 = sphi 0, %s44
    %s59 = sphi 0, %s45
    %s65 = sphi 0, %s67
    %s68 = sphi 0, %s65
    %s69 = sphi 0, %s68
    %s85 = sphi 0, %s69
  $region4: #{ada_layer_norm.1} parent=0 // loop_header_branch
    %11 = sbr.rel (%p9) target = $region8
  $region5: #{ada_layer_norm.1} parent=0 // loop_body
    %s13 = ssub.s32 %s8, 1
    %s14 = ssub.s32 %s8, 2
    %s15 = sadd.s32 %s8, 1
    %s16 = ssub.s32 %s8, %s15
    %p17 = scmp.eq.s32.totalorder %s16, 0
    %s19 = sadd.s32 %s18, 1
    %s20 = scalar_select %p17, %s18, %s19
    %p23 = pneg %p17
    %p24 = scmp.eq.s32.totalorder %s8, 1
    %p25 = por %p23, %p24
    %p26 = scmp.ne.s32.totalorder %s18, %s21
    %p27 = scmp.eq.s32.totalorder %s8, 0
    %p28 = por %p26, %p27
    %p29 = scmp.ne.s32.totalorder %s18, %s21
    %p30 = scmp.eq.s32.totalorder %s13, 1
    %p31 = por %p29, %p30
    %p32 = scmp.ne.s32.totalorder %s21, %s22
    %p33 = scmp.eq.s32.totalorder %s13, 0
    %p34 = por %p32, %p33
    %p35 = scmp.ne.s32.totalorder %s21, %s22
    %p36 = scmp.eq.s32.totalorder %s14, 1
    %p37 = por %p35, %p36
    %p39 = scmp.ne.s32.totalorder %s22, %s38
    %p40 = scmp.eq.s32.totalorder %s14, 0
    %p41 = por %p39, %p40
    %s43 = sadd.s32 %s42, 1
    %p46 = scmp.eq.s32.totalorder %s8, 1
    %p47 = scmp.ne.s32.totalorder %s42, %s44
    %p48 = scmp.eq.s32.totalorder %s8, 0
    %p49 = por %p47, %p48
    %p50 = scmp.ne.s32.totalorder %s42, %s44
    %p51 = scmp.eq.s32.totalorder %s13, 1
    %p52 = por %p50, %p51
    %p53 = scmp.ne.s32.totalorder %s44, %s45
    %p54 = scmp.eq.s32.totalorder %s13, 0
    %p55 = por %p53, %p54
    %p56 = scmp.ne.s32.totalorder %s44, %s45
    %p57 = scmp.eq.s32.totalorder %s14, 1
    %p58 = por %p56, %p57
    %p60 = scmp.ne.s32.totalorder %s45, %s59
    %p61 = scmp.eq.s32.totalorder %s14, 0
    %p62 = por %p60, %p61
    %s63 = ssub.s32 %s8, %s15
    %p64 = scmp.eq.s32.totalorder %s63, 0
    %s66 = sadd.s32 %s65, 1
    %s67 = scalar_select %p64, %s65, %s66
    %p70 = pneg %p64
    %p71 = scmp.eq.s32.totalorder %s8, 1
    %p72 = por %p70, %p71
    %p73 = scmp.ne.s32.totalorder %s65, %s68
    %p74 = scmp.eq.s32.totalorder %s8, 0
    %p75 = por %p73, %p74
    %p76 = scmp.ne.s32.totalorder %s65, %s68
    %p77 = scmp.eq.s32.totalorder %s13, 1
    %p78 = por %p76, %p77
    %p79 = scmp.ne.s32.totalorder %s68, %s69
    %p80 = scmp.eq.s32.totalorder %s13, 0
    %p81 = por %p79, %p80
    %p82 = scmp.ne.s32.totalorder %s68, %s69
    %p83 = scmp.eq.s32.totalorder %s14, 1
    %p84 = por %p82, %p83
    %p86 = scmp.ne.s32.totalorder %s69, %s85
    %p87 = scmp.eq.s32.totalorder %s14, 0
    %p88 = por %p86, %p87
    %p89 = scmp.le.s32.totalorder 1, %s8
    %p90 = scmp.lt.s32.totalorder %s8, 3
    %p91 = pnand %p89, %p90
    %p92 = pneg %p91
    // Predicated region
    $region9: #{ada_layer_norm.1} parent=5 // pred_check
      _
    $region10: #{ada_layer_norm.1} parent=5 // pred_check_branch
      %94 = sbr.rel (%p91) target = $region12
    $region11: #{ada_layer_norm.1} parent=5 // pred_region
      %s95 = ssub.s32 %s8, 1
      // Predicated region
      $region13: #{ada_layer_norm.1} parent=11 // pred_check
        %p96 = pneg %p55
      $region14: #{ada_layer_norm.1} parent=11 // pred_check_branch
        %98 = sbr.rel (%p96) target = $region16
      $region15: #{ada_layer_norm.1} parent=11 // pred_region
        _
      $region16: #{ada_layer_norm.1} parent=11 // pred_fallthru
        _
    $region12: #{ada_layer_norm.1} parent=5 // pred_fallthru
      _
    %p99 = scmp.lt.s32.totalorder %s8, 2
    // Predicated region
    $region17: #{ada_layer_norm.1} parent=5 // pred_check
      %p100 = pneg %p99
    $region18: #{ada_layer_norm.1} parent=5 // pred_check_branch
      %102 = sbr.rel (%p100) target = $region20
    $region19: #{ada_layer_norm.1} parent=5 // pred_region
      // Predicated region
      $region21: #{ada_layer_norm.1} parent=19 // pred_check
        %p103 = pneg %p28
      $region22: #{ada_layer_norm.1} parent=19 // pred_check_branch
        %105 = sbr.rel (%p103) target = $region24
      $region23: #{ada_layer_norm.1} parent=19 // pred_region
        %p106 = scmp.lt.s32.totalorder %s8, 1
        %s107 = scalar_select %p106, %s8, 1
        %s108 = smul.addr %s107, 8
        %s109 = scalar_lea.vmem %s0, %s108
      $region24: #{ada_layer_norm.1} parent=19 // pred_fallthru
        _
    $region20: #{ada_layer_norm.1} parent=5 // pred_fallthru
      _
    %p110 = scmp.le.s32.totalorder 1, %s8
    %p111 = scmp.lt.s32.totalorder %s8, 3
    %p112 = pnand %p110, %p111
    %p113 = pneg %p112
    // Predicated region
    $region25: #{ada_layer_norm.1} parent=5 // pred_check
      _
    $region26: #{ada_layer_norm.1} parent=5 // pred_check_branch
      %115 = sbr.rel (%p112) target = $region28
    $region27: #{ada_layer_norm.1} parent=5 // pred_region
      %s116 = ssub.s32 %s8, 1
      %p117 = scmp.lt.s32.totalorder %s13, 1
      %s118 = scalar_select %p117, %s13, 1
      %s119 = smul.addr %s118, 8
      %s120 = scalar_lea.vmem %s0, %s119
      %p121 = pneg %p34
      %p122 = pneg %p31
      %p123 = pneg %p55
      %p124 = pneg %p52
      %p125 = pneg %p81
      %p126 = pneg %p78
      %p127 = scmp.lt.s32.totalorder %s13, 1
      %s128 = scalar_select %p127, %s13, 1
      %s129 = smul.addr %s128, 8
      %s130 = scalar_lea.vmem %s2, %s129
      %p131 = scmp.lt.s32.totalorder %s13, 1
      %s132 = scalar_select %p131, %s13, 1
      %s133 = smul.addr %s132, 8
      %s134 = scalar_lea.vmem %s0, %s133
      %p135 = scmp.lt.s32.totalorder %s13, 1
      %s136 = scalar_select %p135, %s13, 1
      %s137 = smul.addr %s136, 8
      %s138 = scalar_lea.vmem %s2, %s137
      %v139 = vld [vmem:[%s134] sm:$0xff]
      %140 = vadd.xlane.f32.xlu0 %v139
      %v141 = vpop.xlane.xlu0 %140
      %v142 = vmul.f32 %v139, %v139
      %143 = vadd.xlane.f32.xlu0 %v142
      %v144 = vpop.xlane.xlu0 %143
      %v145 = vmul.f32 %v141, 0.03125
      %v146 = vmul.f32 %v144, 0.03125
      %v147 = vmul.f32 %v145, %v145
      %v148 = vsub.f32 %v146, %v147
      %v149 = vmax.f32 %v148, 0.0
      %v150 = vadd.f32 %v149, 1e-05
      %v151 = vrsqrt.pop %v150
      %v152 = vld [vmem:[%s1] sm:$0x3]
      %v153 = vlaneseq
      %v154 = vshrl.u32 %v153, 7
      %v155 = vsub.s32 0, %v154
      %v156 = vrot.slane %v152, %v155
      %v157 = vmul.f32 %v151, %v156
      %v158 = vmul.f32 %v145, %v157
      %v159 = vlaneseq
      %v160 = vshrl.u32 %v159, 7
      %v161 = vsub.s32 1, %v160
      %v162 = vrot.slane %v152, %v161
      %v163 = vsub.f32 %v162, %v158
      %v164 = vmul.f32 %v139, %v157
      %v165 = vadd.f32 %v164, %v163
      %166 = vst [vmem:[%s138] sm:$0xff] %v165
      %p167 = scmp.lt.s32.totalorder %s13, 1
      %s168 = scalar_select %p167, %s13, 1
      %s169 = smul.addr %s168, 8
      %s170 = scalar_lea.vmem %s2, %s169
      // Predicated region
      $region29: #{ada_layer_norm.1} parent=27 // pred_check
        %p171 = pneg %p78
      $region30: #{ada_layer_norm.1} parent=27 // pred_check_branch
        %173 = sbr.rel (%p171) target = $region32
      $region31: #{ada_layer_norm.1} parent=27 // pred_region
        _
      $region32: #{ada_layer_norm.1} parent=27 // pred_fallthru
        _
    $region28: #{ada_layer_norm.1} parent=5 // pred_fallthru
      _
    %p174 = scmp.le.s32.totalorder 2, %s8
    // Predicated region
    $region33: #{ada_layer_norm.1} parent=5 // pred_check
      %p175 = pneg %p174
    $region34: #{ada_layer_norm.1} parent=5 // pred_check_branch
      %177 = sbr.rel (%p175) target = $region36
    $region35: #{ada_layer_norm.1} parent=5 // pred_region
      %s178 = ssub.s32 %s8, 2
      // Predicated region
      $region37: #{ada_layer_norm.1} parent=35 // pred_check
        %p179 = pneg %p84
      $region38: #{ada_layer_norm.1} parent=35 // pred_check_branch
        %181 = sbr.rel (%p179) target = $region40
      $region39: #{ada_layer_norm.1} parent=35 // pred_region
        %p182 = scmp.lt.s32.totalorder %s14, 1
        %s183 = scalar_select %p182, %s14, 1
        %s184 = smul.addr %s183, 8
        %s185 = scalar_lea.vmem %s2, %s184
      $region40: #{ada_layer_norm.1} parent=35 // pred_fallthru
        _
    $region36: #{ada_layer_norm.1} parent=5 // pred_fallthru
      _
  $region6: #{ada_layer_norm.1} parent=0 // loop_footer
    %s12 = sadd.s32 1, %s8
  $region7: #{ada_layer_norm.1} parent=0 // loop_footer_branch
    %7 = sbr.rel target = $region3
  $region8: #{ada_layer_norm.1} parent=0 // loop_exit
    _

</llo_original>
